<compile_context>
chip_gen: v5e
topology: v5e:2x2
jax: 0.10.0
libtpu: 0.0.40
codegen_flags: <defaults>
</compile_context>

<pallas_src>
import functools

import jax
import jax.numpy as jnp
from jax.experimental import pallas as pl
from jax.experimental.pallas import tpu as pltpu

NEG_SLOPE = 1.0 / 5.5  # matches F.leaky_relu(..., negative_slope=1/5.5)


def _mlp_kernel(x_ref, w1b_ref, w2b_ref, o_ref, *, transpose_out):
    """Fused 2-layer MLP; biases are stored as the last row of each weight matrix.

    x_ref:   (tm, D)    activations tile (rows = opponents)
    w1b_ref: (D+1, H1)  [w1; b1]
    w2b_ref: (H1+1, H2) [w2; b2]
    o_ref:   (H2, tm) if transpose_out else (tm, H2)
    """
    d = w1b_ref.shape[0] - 1    # input features
    h1 = w2b_ref.shape[0] - 1   # hidden features

    x = x_ref[...]                                                       # (tm, D)
    h = jnp.dot(x, w1b_ref[:d, :], preferred_element_type=jnp.float32)   # (tm, H1)
    h = h + w1b_ref[d:d + 1, :]                                          # + b1
    # leaky_relu with negative_slope = 1/5.5 (< 1, so max(h, slope*h) is exact).
    h = jnp.maximum(h, h * NEG_SLOPE)
    o = jnp.dot(h, w2b_ref[:h1, :], preferred_element_type=jnp.float32)  # (tm, H2)
    o = o + w2b_ref[h1:h1 + 1, :]                                        # + b2
    if transpose_out:
        # Lane-dense store: batch dim on the 128-wide lane axis (H2 << 128).
        # The transpose rides the (otherwise idle) XLU slot.
        o_ref[...] = jnp.transpose(o)                                    # (H2, tm)
    else:
        o_ref[...] = o


def prepare_params(w1, b1, w2, b2, dtype=jnp.float32):
    """One-time parameter prep: cast and fold biases into the weights.

    Returns:
      w1b: (D+1, H1)  -- w1 with b1 appended as the last row.
      w2b: (H1+1, H2) -- w2 with b2 appended as the last row.

    Pass dtype=jnp.bfloat16 to stream weights (and x) in bf16; accumulation in
    the kernel stays float32.  Expect ~1e-2-level relative error vs f32 torch.
    """
    w1 = jnp.asarray(w1, dtype)
    w2 = jnp.asarray(w2, dtype)
    b1 = jnp.asarray(b1, dtype).reshape(1, -1)
    b2 = jnp.asarray(b2, dtype).reshape(1, -1)
    w1b = jnp.concatenate([w1, b1], axis=0)
    w2b = jnp.concatenate([w2, b2], axis=0)
    return w1b, w2b


def _cost_estimate(m, d, h1, h2, itemsize=4):
    flops = 2 * m * d * h1 + 2 * m * h1 * h2 + 3 * m * h1  # matmuls + bias/leaky
    bytes_accessed = itemsize * (m * d + (d + 1) * h1 + (h1 + 1) * h2) + 4 * m * h2
    return pl.CostEstimate(flops=flops, transcendentals=0,
                           bytes_accessed=bytes_accessed)


def _resolve_tile(n, tm):
    """Pick a batch tile: large (amortize per-step cost) but >=2 grid steps when
    possible (v7x megacore), and always satisfying the (8,128) block rules."""
    if tm is None:
        if n <= 256:
            return n                      # single whole block (dims == array dims)
        half = -(-n // 2)                 # cdiv(n, 2)
        tm = ((half + 255) // 256) * 256  # round up to 256
        return min(2048, tm)
    tm = int(tm)
    if tm >= n:
        return n
    return max(128, ((tm + 127) // 128) * 128)   # keep the lane-dim 128-aligned


@jax.jit
def opp_aware_net_forward(opp_params_flat, w1b, w2b):
    """Single-opponent forward (matches OppAwareNet1stFixed.forward).

    opp_params_flat: (D,) flattened opponent parameters (row-major, like .view(-1)).
    w1b, w2b: outputs of prepare_params().
    Returns: (H2,) float32.

    For many opponents, stack them and use opp_aware_net_forward_batched — the
    single call is launch/weight-traffic bound and cannot be made faster in-kernel.
    """
    d = w1b.shape[0] - 1
    h1 = w2b.shape[0] - 1
    h2 = w2b.shape[1]
    x = opp_params_flat.reshape(1, d)

    vmem = pl.BlockSpec(memory_space=pltpu.MemorySpace.VMEM)
    out = pl.pallas_call(
        functools.partial(_mlp_kernel, transpose_out=False),
        out_shape=jax.ShapeDtypeStruct((1, h2), jnp.float32),
        in_specs=[vmem, vmem, vmem],
        out_specs=vmem,
        cost_estimate=_cost_estimate(1, d, h1, h2),
    )(x, w1b, w2b)
    return out.reshape(-1)


@functools.partial(jax.jit, static_argnames=("tm",))
def opp_aware_net_forward_batched(opp_params_batch, w1b, w2b, *, tm=None):
    """Batched forward over N opponents: (N, D) -> (N, H2).  The real perf path.

    * No padding: Pallas clips the ragged last block on read and write.
    * Output is computed lane-dense (H2, N) in-kernel and transposed once outside.
    * Pass x / weights in bf16 (see prepare_params) to halve HBM traffic.
    """
    if opp_params_batch.ndim != 2:
        raise ValueError("opp_params_batch must be (N, D)")
    n, d = opp_params_batch.shape
    if d != w1b.shape[0] - 1:
        raise ValueError(f"input dim {d} != w1 rows {w1b.shape[0] - 1}")
    h1 = w2b.shape[0] - 1
    h2 = w2b.shape[1]
    itemsize = jnp.dtype(opp_params_batch.dtype).itemsize

    tile = _resolve_tile(n, tm)
    grid = (pl.cdiv(n, tile),)

    out_t = pl.pallas_call(
        functools.partial(_mlp_kernel, transpose_out=True),
        out_shape=jax.ShapeDtypeStruct((h2, n), jnp.float32),
        grid=grid,
        in_specs=[
            pl.BlockSpec((tile, d), lambda i: (i, 0)),
            pl.BlockSpec((d + 1, h1), lambda i: (0, 0)),
            pl.BlockSpec((h1 + 1, h2), lambda i: (0, 0)),
        ],
        out_specs=pl.BlockSpec((h2, tile), lambda i: (0, i)),
        compiler_params=pltpu.CompilerParams(dimension_semantics=("parallel",)),
        cost_estimate=_cost_estimate(n, d, h1, h2, itemsize),
    )(opp_params_batch, w1b, w2b)
    # One small (H2, N) -> (N, H2) transpose outside the kernel (32N bytes,
    # ~3% of the x stream) buys full-lane stores inside it.
    return out_t.T


if __name__ == "__main__":
    # Hyperparameters implied by the module:
    #   layer_sizes = [None, H1, H2]; fixed_layers=(0,), bias=False
    #   -> D (input dim) = H1 * H2 (the opponent net's single trainable param w2).
    H1, H2 = 32, 8
    D = H1 * H2
    init_std = 1.0

    key = jax.random.PRNGKey(0)
    k_w1, k_b1, k_w2, k_b2, k_opp, k_batch = jax.random.split(key, 6)

    # Deterministic parameter init (module uses normal_(0, init_std) weights and
    # zero biases; we use small nonzero biases here so bias folding is exercised).
    w1 = init_std * jax.random.normal(k_w1, (D, H1), dtype=jnp.float32)
    b1 = 0.1 * jax.random.normal(k_b1, (H1,), dtype=jnp.float32)
    w2 = init_std * jax.random.normal(k_w2, (H1, H2), dtype=jnp.float32)
    b2 = 0.1 * jax.random.normal(k_b2, (H2,), dtype=jnp.float32)

    # One-time prep (cast + fold biases); reused across calls.
    w1b, w2b = prepare_params(w1, b1, w2, b2)

    def ref_fwd(x2d):
        h = x2d @ w1 + b1
        h = jnp.where(h >= 0.0, h, h * NEG_SLOPE)
        return h @ w2 + b2

    # --- single-opponent call (module semantics) ---
    # Opponent net's only registered nn.Parameter is its w2 of shape (H1, H2).
    opp_w2 = init_std * jax.random.normal(k_opp, (H1, H2), dtype=jnp.float32)
    opp_params_flat = opp_w2.reshape(-1)            # row-major flatten == .view(-1)

    out1 = jax.block_until_ready(opp_aware_net_forward(opp_params_flat, w1b, w2b))
    ref1 = ref_fwd(opp_params_flat.reshape(1, D)).reshape(-1)
    assert out1.shape == (H2,)
    scale1 = float(jnp.max(jnp.abs(ref1))) + 1e-3
    assert float(jnp.max(jnp.abs(out1 - ref1))) <= 2e-2 * scale1, (out1, ref1)

    # --- batched call (many opponents; ragged N exercises the no-pad path) ---
    N = 300
    opp_batch = jax.random.normal(k_batch, (N, D), dtype=jnp.float32)
    out_b = jax.block_until_ready(opp_aware_net_forward_batched(opp_batch, w1b, w2b))
    ref_b = ref_fwd(opp_batch)
    assert out_b.shape == (N, H2)
    scale_b = float(jnp.max(jnp.abs(ref_b))) + 1e-3
    assert float(jnp.max(jnp.abs(out_b - ref_b))) <= 2e-2 * scale_b

    # --- optional bf16-streaming path (halves the dominant x HBM stream) ---
    w1b_bf, w2b_bf = prepare_params(w1, b1, w2, b2, dtype=jnp.bfloat16)
    out_bf = jax.block_until_ready(
        opp_aware_net_forward_batched(opp_batch.astype(jnp.bfloat16), w1b_bf, w2b_bf))
    assert out_bf.shape == (N, H2)
    assert float(jnp.max(jnp.abs(out_bf - ref_b))) <= 1e-1 * scale_b

    print("KERNEL_OK")
</pallas_src>

<mosaic_0001>
module attributes {stable_mosaic.version = 11 : i64} {
  func.func @_mlp_kernel(%arg0: memref<1x256xf32, #tpu.memory_space<vmem>>, %arg1: memref<257x32xf32, #tpu.memory_space<vmem>>, %arg2: memref<33x8xf32, #tpu.memory_space<vmem>>, %arg3: memref<1x8xf32, #tpu.memory_space<vmem>>) attributes {dimension_semantics = [], scalar_prefetch = 0 : i64, scratch_operands = 0 : i64, tpu.core_type = #tpu.core_type<tc>} {
    %c0 = arith.constant 0 : index
    %c0_0 = arith.constant 0 : index
    %0 = vector.load %arg0[%c0, %c0_0] : memref<1x256xf32, #tpu.memory_space<vmem>>, vector<1x256xf32>
    %c0_1 = arith.constant 0 : index
    %c0_2 = arith.constant 0 : index
    %1 = vector.load %arg1[%c0_1, %c0_2] : memref<257x32xf32, #tpu.memory_space<vmem>>, vector<256x32xf32>
    %cst = arith.constant dense<0.000000e+00> : vector<1x32xf32>
    %2 = tpu.matmul %0, %1, %cst {dimension_numbers = #tpu.dot_dimension_numbers<[1], [0], [0], [1], [0, 0, 1, 1], [], []>} : vector<1x256xf32>, vector<256x32xf32>, vector<1x32xf32> -> vector<1x32xf32>
    %c256 = arith.constant 256 : index
    %c0_3 = arith.constant 0 : index
    %3 = vector.load %arg1[%c256, %c0_3] : memref<257x32xf32, #tpu.memory_space<vmem>>, vector<1x32xf32>
    %4 = arith.addf %2, %3 : vector<1x32xf32>
    %cst_4 = arith.constant 0.181818187 : f32
    %5 = vector.broadcast %cst_4 : f32 to vector<1x32xf32>
    %6 = arith.mulf %4, %5 : vector<1x32xf32>
    %7 = arith.maximumf %4, %6 : vector<1x32xf32>
    %c0_5 = arith.constant 0 : index
    %c0_6 = arith.constant 0 : index
    %8 = vector.load %arg2[%c0_5, %c0_6] : memref<33x8xf32, #tpu.memory_space<vmem>>, vector<32x8xf32>
    %cst_7 = arith.constant dense<0.000000e+00> : vector<1x8xf32>
    %9 = tpu.matmul %7, %8, %cst_7 {dimension_numbers = #tpu.dot_dimension_numbers<[1], [0], [0], [1], [0, 0, 1, 1], [], []>} : vector<1x32xf32>, vector<32x8xf32>, vector<1x8xf32> -> vector<1x8xf32>
    %c32 = arith.constant 32 : index
    %c0_8 = arith.constant 0 : index
    %10 = vector.load %arg2[%c32, %c0_8] : memref<33x8xf32, #tpu.memory_space<vmem>>, vector<1x8xf32>
    %11 = arith.addf %9, %10 : vector<1x8xf32>
    %c0_9 = arith.constant 0 : index
    %c0_10 = arith.constant 0 : index
    %12 = vector.load %arg3[%c0_9, %c0_10] : memref<1x8xf32, #tpu.memory_space<vmem>>, vector<1x8xf32>
    tpu.vector_store %arg3[%c0_9, %c0_10], %11 {strides = array<i32>} : memref<1x8xf32, #tpu.memory_space<vmem>>, vector<1x8xf32>,
    return
  }
}

</mosaic_0001>

<llo_original>
// kernel: opp_aware_net_forward.1
$region0: #{opp_aware_net_forward.1}
  #allocation0 [shape = 'u32[]', space=smem, size = 0x4, offset = 0x4, fixed_abs, tag = 'smem constant byte address 0x4 - core index']
  #allocation1 [shape = 'u32[72,128]{1,0:T(1,128)}', space=vmem, size = 0x9000, scoped, tag = 'internal scratch']
  %s0 = inlined_call_operand.vmem [shape: f32[1,256], index: 0, kind: input, shape index: {}]
  %s1 = inlined_call_operand.vmem [shape: f32[257,32], index: 1, kind: input, shape index: {}]
  %s2 = inlined_call_operand.vmem [shape: f32[33,8], index: 2, kind: input, shape index: {}]
  %s3 = inlined_call_operand.hbm [shape: f32[1,8], index: 3, kind: output, shape index: {}]
  %s4 = sld [smem:[#allocation0]]
  $region22: #{opp_aware_net_forward.1} parent=0
    _
  %s6 = ssub.s32 1, %s4
  %s7 = scalar_select 0, %s6, %s4
  $region1: #{opp_aware_net_forward.1} parent=0
    #allocation2 [shape = 'u8[512]{0}', space=vmem, size = 0x400, scoped, tag = 'output window, operand 0, single buffered']
    #allocation3 [shape = 's32[1]{0}', space=sflag, size = 0x4, scoped, tag = 'scoped memory for opp_aware_net_forward.1']
    %8 = vsyncpa [#allocation3], 0
    // Predicated region
    $region2: #{opp_aware_net_forward.1} parent=1 // pred_check
      _
    $region3: #{opp_aware_net_forward.1} parent=1 // pred_check_branch
      %10 = sbr.rel (0) target = $region5
    $region4: #{opp_aware_net_forward.1} parent=1 // pred_region
      _
    $region5: #{opp_aware_net_forward.1} parent=1 // pred_fallthru
      _
    // Predicated region
    $region6: #{opp_aware_net_forward.1} parent=1 // pred_check
      _
    $region7: #{opp_aware_net_forward.1} parent=1 // pred_check_branch
      %12 = sbr.rel (0) target = $region9
    $region8: #{opp_aware_net_forward.1} parent=1 // pred_region
      _
    $region9: #{opp_aware_net_forward.1} parent=1 // pred_fallthru
      _
    // Predicated region
    $region10: #{opp_aware_net_forward.1} parent=1 // pred_check
      _
    $region11: #{opp_aware_net_forward.1} parent=1 // pred_check_branch
      %14 = sbr.rel (0) target = $region13
    $region12: #{opp_aware_net_forward.1} parent=1 // pred_region
      _
    $region13: #{opp_aware_net_forward.1} parent=1 // pred_fallthru
      _
    %v15 = vld [vmem:[%s0] sm:$0x3]
    %v16 = vld [vmem:[%s1] sm:$0xff]
    %v17 = vld [vmem:[%s1 + $0x8] sm:$0xff]
    %v18 = vld [vmem:[%s1 + $0x10] sm:$0xff]
    %v19 = vld [vmem:[%s1 + $0x18] sm:$0xff]
    %v20 = vld [vmem:[%s1 + $0x20] sm:$0xff]
    %v21 = vld [vmem:[%s1 + $0x28] sm:$0xff]
    %v22 = vld [vmem:[%s1 + $0x30] sm:$0xff]
    %v23 = vld [vmem:[%s1 + $0x38] sm:$0xff]
    %v24 = vld [vmem:[%s1 + $0x40] sm:$0xff]
    %v25 = vld [vmem:[%s1 + $0x48] sm:$0xff]
    %v26 = vld [vmem:[%s1 + $0x50] sm:$0xff]
    %v27 = vld [vmem:[%s1 + $0x58] sm:$0xff]
    %v28 = vld [vmem:[%s1 + $0x60] sm:$0xff]
    %v29 = vld [vmem:[%s1 + $0x68] sm:$0xff]
    %v30 = vld [vmem:[%s1 + $0x70] sm:$0xff]
    %v31 = vld [vmem:[%s1 + $0x78] sm:$0xff]
    %v32 = vld [vmem:[%s1 + $0x80] sm:$0xff]
    %v33 = vld [vmem:[%s1 + $0x88] sm:$0xff]
    %v34 = vld [vmem:[%s1 + $0x90] sm:$0xff]
    %v35 = vld [vmem:[%s1 + $0x98] sm:$0xff]
    %v36 = vld [vmem:[%s1 + $0xa0] sm:$0xff]
    %v37 = vld [vmem:[%s1 + $0xa8] sm:$0xff]
    %v38 = vld [vmem:[%s1 + $0xb0] sm:$0xff]
    %v39 = vld [vmem:[%s1 + $0xb8] sm:$0xff]
    %v40 = vld [vmem:[%s1 + $0xc0] sm:$0xff]
    %v41 = vld [vmem:[%s1 + $0xc8] sm:$0xff]
    %v42 = vld [vmem:[%s1 + $0xd0] sm:$0xff]
    %v43 = vld [vmem:[%s1 + $0xd8] sm:$0xff]
    %v44 = vld [vmem:[%s1 + $0xe0] sm:$0xff]
    %v45 = vld [vmem:[%s1 + $0xe8] sm:$0xff]
    %v46 = vld [vmem:[%s1 + $0xf0] sm:$0xff]
    %v47 = vld [vmem:[%s1 + $0xf8] sm:$0xff]
    %v48 = vld [vmem:[%s1 + $0x100] sm:$0x1]
    %v50 = vperm.slane %v15, 0
    %v51 = vperm.slane %v15, 1
    %54 = vmatpush.msra.mxu0 %v31
    %55 = vmatpush.msra.mxu0 %v30
    %56 = vmatpush.msra.mxu0 %v29
    %57 = vmatpush.msra.mxu0 %v28
    %58 = vmatpush.msra.mxu0 %v27
    %59 = vmatpush.msra.mxu0 %v26
    %60 = vmatpush.msra.mxu0 %v25
    %61 = vmatpush.msra.mxu0 %v24
    %62 = vmatpush.msra.mxu0 %v23
    %63 = vmatpush.msra.mxu0 %v22
    %64 = vmatpush.msra.mxu0 %v21
    %65 = vmatpush.msra.mxu0 %v20
    %66 = vmatpush.msra.mxu0 %v19
    %67 = vmatpush.msra.mxu0 %v18
    %68 = vmatpush.msra.mxu0 %v17
    %69 = vmatpush.msra.mxu0 %v16
    %70 = vmatmul.f32.gmra.mxu0 %v50
    %v71 = vpop.f32.mrf.mxu0
    %v72 = vadd.f32 %v48, %v71
    %73 = vdwg.mxu0
    %74 = vmatpush.msra.mxu0 %v47
    %75 = vmatpush.msra.mxu0 %v46
    %76 = vmatpush.msra.mxu0 %v45
    %77 = vmatpush.msra.mxu0 %v44
    %78 = vmatpush.msra.mxu0 %v43
    %79 = vmatpush.msra.mxu0 %v42
    %80 = vmatpush.msra.mxu0 %v41
    %81 = vmatpush.msra.mxu0 %v40
    %82 = vmatpush.msra.mxu0 %v39
    %83 = vmatpush.msra.mxu0 %v38
    %84 = vmatpush.msra.mxu0 %v37
    %85 = vmatpush.msra.mxu0 %v36
    %86 = vmatpush.msra.mxu0 %v35
    %87 = vmatpush.msra.mxu0 %v34
    %88 = vmatpush.msra.mxu0 %v33
    %89 = vmatpush.msra.mxu0 %v32
    %90 = vmatmul.f32.gmra.mxu0 %v51
    %v91 = vpop.f32.mrf.mxu0
    %v92 = vadd.f32 %v72, %v91
    %93 = vdwg.mxu0
    %v94 = vmul.f32 %v92, 0.18181819
    %v95 = vmax.f32 %v92, %v94
    %v96 = vld [vmem:[%s2] sm:$0xff]
    %v97 = vld [vmem:[%s2 + $0x8] sm:$0xff]
    %v98 = vld [vmem:[%s2 + $0x10] sm:$0xff]
    %v99 = vld [vmem:[%s2 + $0x18] sm:$0xff]
    %v100 = vld [vmem:[%s2 + $0x20] sm:$0x1]
    %vm101 = vcmask 261120
    %v103 = vsel %vm101, %v95, 0
    %105 = vmatpush.msra.mxu0 0.0
    %106 = vmatpush.msra.mxu0 0.0
    %107 = vmatpush.msra.mxu0 0.0
    %108 = vmatpush.msra.mxu0 0.0
    %109 = vmatpush.msra.mxu0 0.0
    %110 = vmatpush.msra.mxu0 0.0
    %111 = vmatpush.msra.mxu0 0.0
    %112 = vmatpush.msra.mxu0 0.0
    %113 = vmatpush.msra.mxu0 0.0
    %114 = vmatpush.msra.mxu0 0.0
    %115 = vmatpush.msra.mxu0 0.0
    %116 = vmatpush.msra.mxu0 0.0
    %117 = vmatpush.msra.mxu0 %v99
    %118 = vmatpush.msra.mxu0 %v98
    %119 = vmatpush.msra.mxu0 %v97
    %120 = vmatpush.msra.mxu0 %v96
    %121 = vmatmul.f32.gmra.mxu0 %v103
    %v122 = vpop.f32.mrf.mxu0
    %v123 = vadd.f32 %v100, %v122
    %124 = vdwg.mxu0
    %vm125 = vcmask 57344
    %126 = vst.msk [vmem:[#allocation2] sm:$0x1] %vm125, %v123
    // Predicated region
    $region14: #{opp_aware_net_forward.1} parent=1 // pred_check
      _
    $region15: #{opp_aware_net_forward.1} parent=1 // pred_check_branch
      %128 = sbr.rel (0) target = $region17
    $region16: #{opp_aware_net_forward.1} parent=1 // pred_region
      %130 = vsyncadd [#allocation3], 0
      %s132 = sshll.u32 [#allocation2], 4
      %s133 = int_to_ptr.vmem [resolvable:$true] %s132
      %s134 = sshll.u32 %s3, 4
      %s135 = int_to_ptr.hbm [resolvable:$true] %s134
      %137 = dma.vmem_to_hbm [thread:$0]  %s133, 16, %s135, [#allocation3]
    $region17: #{opp_aware_net_forward.1} parent=1 // pred_fallthru
      _
    // Predicated region
    $region18: #{opp_aware_net_forward.1} parent=1 // pred_check
      _
    $region19: #{opp_aware_net_forward.1} parent=1 // pred_check_branch
      %139 = sbr.rel (0) target = $region21
    $region20: #{opp_aware_net_forward.1} parent=1 // pred_region
      %141 = dma.done [#allocation3], 16
    $region21: #{opp_aware_net_forward.1} parent=1 // pred_fallthru
      _
    %142 = vsyncpa [#allocation3], 1

</llo_original>
